<compile_context>
chip_gen: v7x
topology: tpu7x:2x2x1
jax: 0.10.0
libtpu: 0.0.40
codegen_flags: <defaults>
</compile_context>

<pallas_src>
import functools

import jax
import jax.numpy as jnp
from jax.experimental import pallas as pl
from jax.experimental.pallas import tpu as pltpu

B_J0 = 0.01       # b_j0_value (baseline threshold)
R_M = 1.0         # membrane resistance
DT = 1.0          # time step
BETA_ADAPT = 1.8  # adaptation strength when is_adaptive=1
LANE = 128        # TPU lane width


def _round_up(x, m):
    return (x + m - 1) // m * m


def _spike_bidense_seq_kernel(x1_ref, x2_ref, w_ref, bias_ref, alpha_ref, ro_ref,
                              mem0_ref, spike0_ref, b0_ref,
                              mem_out_ref, spike_out_ref, theta_out_ref, b_out_ref,
                              mem_sc, spike_sc, b_sc,
                              *, is_adaptive: bool):
    t = pl.program_id(0)

    # Initialize the recurrent state carried in VMEM scratch on the first timestep.
    @pl.when(t == 0)
    def _():
        mem_sc[...] = mem0_ref[...]
        spike_sc[...] = spike0_ref[...]
        b_sc[...] = b0_ref[...]

    x1 = x1_ref[0]                       # (B, D1)  bf16
    x2 = x2_ref[0]                       # (B, D2)  bf16
    bsz, d1 = x1.shape
    d2 = x2.shape[1]

    # ---- Bilinear as a single MXU matmul ----
    # x12[b, i*D2 + j] = x1[b, i] * x2[b, j];  d_input = x12 @ W_flat + bias
    x12 = (x1[:, :, None] * x2[:, None, :]).reshape(bsz, d1 * d2)
    d_input = jnp.dot(x12, w_ref[...],
                      preferred_element_type=jnp.float32) + bias_ref[...]  # (B, O)

    # ---- mem_update_adp (adaptive LIF neuron) ----
    alpha = alpha_ref[...]               # (1, O) precomputed exp(-dt/tau_m)
    ro = ro_ref[...]                     # (1, O) precomputed exp(-dt/tau_adp)
    mem = mem_sc[...]                    # (B, O)
    spike = spike_sc[...]                # (B, O)
    b = b_sc[...]                        # (B, O)

    beta = BETA_ADAPT if is_adaptive else 0.0
    b_new = ro * b + (1.0 - ro) * spike
    theta = B_J0 + beta * b_new
    mem_new = mem * alpha + (1.0 - alpha) * R_M * d_input - theta * spike * DT
    spike_new = (mem_new - theta > 0.0).astype(jnp.float32)

    # carry state
    mem_sc[...] = mem_new
    spike_sc[...] = spike_new
    b_sc[...] = b_new

    # per-step outputs
    mem_out_ref[0] = mem_new
    spike_out_ref[0] = spike_new
    theta_out_ref[0] = theta
    b_out_ref[0] = b_new


def spike_bidense_forward_seq(x1_seq, x2_seq, weight, bias, tau_m, tau_adp,
                              mem0, spike0, b0, *, is_adaptive=True,
                              param_dtype=jnp.bfloat16, vmem_limit_bytes=None):
    """Runs T forward steps of spike_Bidense with the time recurrence fused in-kernel.

    Args:
      x1_seq: (T, B, D1) input spikes for stream 1
      x2_seq: (T, B, D2) input spikes for stream 2
      weight: (O, D1, D2)  -- PyTorch nn.Bilinear layout
      bias, tau_m, tau_adp: (O,)
      mem0, spike0, b0: (B, O) initial neuron state
    Returns:
      (mem_seq, spike_seq, theta_seq, b_seq), each (T, B, O).
    """
    T, bsz, d1 = x1_seq.shape
    _, _, d2 = x2_seq.shape
    out_dim = bias.shape[0]
    o_pad = _round_up(out_dim, LANE)     # lane-dense output feature axis

    # -------- hoisted, once-per-sequence layout plumbing (plain JAX) --------
    # (O, D1, D2) -> (D1, D2, O) -> (D1*D2, O); pad O to a multiple of 128 lanes.
    w_flat = jnp.transpose(weight.astype(jnp.float32), (1, 2, 0)).reshape(d1 * d2, out_dim)
    w_flat = jnp.pad(w_flat, ((0, 0), (0, o_pad - out_dim))).astype(param_dtype)

    def pad_row(v):
        return jnp.pad(v.astype(jnp.float32).reshape(1, out_dim),
                       ((0, 0), (0, o_pad - out_dim)))

    bias2 = pad_row(bias)
    alpha2 = pad_row(jnp.exp(-DT / tau_m.astype(jnp.float32)))    # precomputed once
    ro2 = pad_row(jnp.exp(-DT / tau_adp.astype(jnp.float32)))     # precomputed once

    def pad_state(s):
        return jnp.pad(s.astype(jnp.float32), ((0, 0), (0, o_pad - out_dim)))

    mem0p, spike0p, b0p = pad_state(mem0), pad_state(spike0), pad_state(b0)

    x1_seq = x1_seq.astype(param_dtype)   # spikes (0/1) are exact in bf16
    x2_seq = x2_seq.astype(param_dtype)

    seq_out = jax.ShapeDtypeStruct((T, bsz, o_pad), jnp.float32)
    out_shapes = (seq_out, seq_out, seq_out, seq_out)

    # per-timestep blocks (stream along the T grid axis)
    def step_spec(feat):
        return pl.BlockSpec((1, bsz, feat), lambda t: (t, 0, 0))

    # constant-index blocks: resident in VMEM across all timesteps (DMA'd once)
    def const2d(shape):
        return pl.BlockSpec(shape, lambda t: (0, 0))

    grid_spec = pltpu.PrefetchScalarGridSpec(
        num_scalar_prefetch=0,
        grid=(T,),
        in_specs=[
            step_spec(d1),               # x1_seq
            step_spec(d2),               # x2_seq
            const2d((d1 * d2, o_pad)),   # W_flat  (resident)
            const2d((1, o_pad)),         # bias
            const2d((1, o_pad)),         # alpha
            const2d((1, o_pad)),         # ro
            const2d((bsz, o_pad)),       # mem0
            const2d((bsz, o_pad)),       # spike0
            const2d((bsz, o_pad)),       # b0
        ],
        out_specs=(
            step_spec(o_pad),            # mem per step
            step_spec(o_pad),            # spike per step
            step_spec(o_pad),            # theta per step
            step_spec(o_pad),            # b per step
        ),
        scratch_shapes=[
            pltpu.VMEM((bsz, o_pad), jnp.float32),   # mem carry
            pltpu.VMEM((bsz, o_pad), jnp.float32),   # spike carry
            pltpu.VMEM((bsz, o_pad), jnp.float32),   # b carry
        ],
    )

    kernel = functools.partial(_spike_bidense_seq_kernel, is_adaptive=is_adaptive)

    mem_s, spike_s, theta_s, b_s = pl.pallas_call(
        kernel,
        out_shape=out_shapes,
        grid_spec=grid_spec,
        compiler_params=pltpu.CompilerParams(
            # time axis is a recurrence -> sequential
            dimension_semantics=("arbitrary",),
            # tuning knob for large (D1*D2, O) weights; default is plenty at demo sizes
            vmem_limit_bytes=vmem_limit_bytes,
        ),
    )(x1_seq, x2_seq, w_flat, bias2, alpha2, ro2, mem0p, spike0p, b0p)

    sl = lambda a: a[:, :, :out_dim]
    return sl(mem_s), sl(spike_s), sl(theta_s), sl(b_s)


def _reference_forward_seq(x1_seq, x2_seq, weight, bias, tau_m, tau_adp,
                           mem0, spike0, b0, is_adaptive=True,
                           param_dtype=jnp.bfloat16):
    """Pure-JAX reference replicating nn.Bilinear + mem_update_adp over T steps.

    Uses the same bf16 weight/input rounding as the kernel, accumulating in f32.
    """
    w = weight.astype(param_dtype).astype(jnp.float32)
    alpha = jnp.exp(-DT / tau_m.astype(jnp.float32))[None, :]
    ro = jnp.exp(-DT / tau_adp.astype(jnp.float32))[None, :]
    beta = BETA_ADAPT if is_adaptive else 0.0

    def step(carry, xs):
        mem, spike, b = carry
        x1, x2 = xs
        x1 = x1.astype(param_dtype).astype(jnp.float32)
        x2 = x2.astype(param_dtype).astype(jnp.float32)
        d_input = jnp.einsum('bi,oij,bj->bo', x1, w, x2) + bias[None, :]
        b_new = ro * b + (1.0 - ro) * spike
        theta = B_J0 + beta * b_new
        mem_new = mem * alpha + (1.0 - alpha) * R_M * d_input - theta * spike * DT
        spike_new = (mem_new - theta > 0.0).astype(jnp.float32)
        return (mem_new, spike_new, b_new), (mem_new, spike_new, theta, b_new)

    _, (mem_s, spike_s, theta_s, b_s) = jax.lax.scan(
        step, (mem0.astype(jnp.float32), spike0.astype(jnp.float32),
               b0.astype(jnp.float32)),
        (x1_seq, x2_seq))
    return mem_s, spike_s, theta_s, b_s


if __name__ == "__main__":
    # Small shapes consistent with the module: two input streams, output neurons, T timesteps.
    T = 8
    batch = 2
    input_dim1 = 16
    input_dim2 = 16
    output_dim = 32

    key = jax.random.PRNGKey(0)
    (k_w, k_bias, k_tm, k_ta, k_x1, k_x2, k_mem) = jax.random.split(key, 7)

    # nn.Bilinear init: U(-bound, bound), bound = 1/sqrt(input_dim1)
    bound = 1.0 / jnp.sqrt(jnp.float32(input_dim1))
    weight = jax.random.uniform(k_w, (output_dim, input_dim1, input_dim2),
                                minval=-bound, maxval=bound, dtype=jnp.float32)
    bias = jax.random.uniform(k_bias, (output_dim,),
                              minval=-bound, maxval=bound, dtype=jnp.float32)
    # tau_m ~ N(20, 5), tau_adp ~ N(100, 5)   (tau_initializer='normal')
    tau_m = 20.0 + 5.0 * jax.random.normal(k_tm, (output_dim,), dtype=jnp.float32)
    tau_adp = 100.0 + 5.0 * jax.random.normal(k_ta, (output_dim,), dtype=jnp.float32)

    # Binary input spike sequences.
    x1_seq = (jax.random.uniform(k_x1, (T, batch, input_dim1)) > 0.5).astype(jnp.float32)
    x2_seq = (jax.random.uniform(k_x2, (T, batch, input_dim2)) > 0.5).astype(jnp.float32)

    # set_neuron_state(batch): mem = rand * b_j0, spike = 0, b = b_j0
    mem0 = jax.random.uniform(k_mem, (batch, output_dim), dtype=jnp.float32) * B_J0
    spike0 = jnp.zeros((batch, output_dim), dtype=jnp.float32)
    b0 = jnp.ones((batch, output_dim), dtype=jnp.float32) * B_J0

    mem_k, spike_k, theta_k, b_k = spike_bidense_forward_seq(
        x1_seq, x2_seq, weight, bias, tau_m, tau_adp, mem0, spike0, b0,
        is_adaptive=True)
    jax.block_until_ready((mem_k, spike_k, theta_k, b_k))

    # Verify against a pure-JAX reference of the PyTorch semantics.
    mem_r, spike_r, theta_r, b_r = _reference_forward_seq(
        x1_seq, x2_seq, weight, bias, tau_m, tau_adp, mem0, spike0, b0,
        is_adaptive=True)

    assert jnp.allclose(mem_k, mem_r, atol=1e-3, rtol=1e-3), "mem mismatch"
    assert jnp.allclose(spike_k, spike_r), "spike mismatch"
    assert jnp.allclose(theta_k, theta_r, atol=1e-5, rtol=1e-5), "theta mismatch"
    assert jnp.allclose(b_k, b_r, atol=1e-5, rtol=1e-5), "b mismatch"

    print("KERNEL_OK")
</pallas_src>

<mosaic_0001>
module attributes {stable_mosaic.version = 11 : i64} {
  func.func @_spike_bidense_seq_kernel(%arg0: i32, %arg1: memref<1x2x16xbf16, #tpu.memory_space<vmem>>, %arg2: memref<1x2x16xbf16, #tpu.memory_space<vmem>>, %arg3: memref<256x128xbf16, #tpu.memory_space<vmem>>, %arg4: memref<1x128xf32, #tpu.memory_space<vmem>>, %arg5: memref<1x128xf32, #tpu.memory_space<vmem>>, %arg6: memref<1x128xf32, #tpu.memory_space<vmem>>, %arg7: memref<2x128xf32, #tpu.memory_space<vmem>>, %arg8: memref<2x128xf32, #tpu.memory_space<vmem>>, %arg9: memref<2x128xf32, #tpu.memory_space<vmem>>, %arg10: memref<1x2x128xf32, #tpu.memory_space<vmem>>, %arg11: memref<1x2x128xf32, #tpu.memory_space<vmem>>, %arg12: memref<1x2x128xf32, #tpu.memory_space<vmem>>, %arg13: memref<1x2x128xf32, #tpu.memory_space<vmem>>, %arg14: memref<2x128xf32, #tpu.memory_space<vmem>>, %arg15: memref<2x128xf32, #tpu.memory_space<vmem>>, %arg16: memref<2x128xf32, #tpu.memory_space<vmem>>) attributes {dimension_semantics = [#tpu.dimension_semantics<arbitrary>], iteration_bounds = array<i64: 8>, scalar_prefetch = 0 : i64, scratch_operands = 3 : i64, tpu.core_type = #tpu.core_type<tc>, window_params = [{transform_indices = @transform_0, window_bounds = array<i64: 1, 2, 16>}, {transform_indices = @transform_1, window_bounds = array<i64: 1, 2, 16>}, {pipeline_mode = #tpu.pipeline_mode<synchronous>, transform_indices = @transform_2, window_bounds = array<i64: 256, 128>}, {pipeline_mode = #tpu.pipeline_mode<synchronous>, transform_indices = @transform_3, window_bounds = array<i64: 1, 128>}, {pipeline_mode = #tpu.pipeline_mode<synchronous>, transform_indices = @transform_4, window_bounds = array<i64: 1, 128>}, {pipeline_mode = #tpu.pipeline_mode<synchronous>, transform_indices = @transform_5, window_bounds = array<i64: 1, 128>}, {pipeline_mode = #tpu.pipeline_mode<synchronous>, transform_indices = @transform_6, window_bounds = array<i64: 2, 128>}, {pipeline_mode = #tpu.pipeline_mode<synchronous>, transform_indices = @transform_7, window_bounds = array<i64: 2, 128>}, {pipeline_mode = #tpu.pipeline_mode<synchronous>, transform_indices = @transform_8, window_bounds = array<i64: 2, 128>}, {transform_indices = @transform_9, window_bounds = array<i64: 1, 2, 128>}, {transform_indices = @transform_10, window_bounds = array<i64: 1, 2, 128>}, {transform_indices = @transform_11, window_bounds = array<i64: 1, 2, 128>}, {transform_indices = @transform_12, window_bounds = array<i64: 1, 2, 128>}]} {
    %c0_i32 = arith.constant 0 : i32
    %0 = arith.cmpi eq, %arg0, %c0_i32 : i32
    %1 = arith.extui %0 : i1 to i32
    %c0_i32_0 = arith.constant 0 : i32
    %2 = arith.cmpi ne, %1, %c0_i32_0 : i32
    scf.if %2 {
      %c0_45 = arith.constant 0 : index
      %c0_46 = arith.constant 0 : index
      %67 = vector.load %arg7[%c0_45, %c0_46] : memref<2x128xf32, #tpu.memory_space<vmem>>, vector<2x128xf32>
      %c0_47 = arith.constant 0 : index
      %c0_48 = arith.constant 0 : index
      %68 = vector.load %arg14[%c0_47, %c0_48] : memref<2x128xf32, #tpu.memory_space<vmem>>, vector<2x128xf32>
      tpu.vector_store %arg14[%c0_47, %c0_48], %67 {strides = array<i32>} : memref<2x128xf32, #tpu.memory_space<vmem>>, vector<2x128xf32>,
      %c0_49 = arith.constant 0 : index
      %c0_50 = arith.constant 0 : index
      %69 = vector.load %arg8[%c0_49, %c0_50] : memref<2x128xf32, #tpu.memory_space<vmem>>, vector<2x128xf32>
      %c0_51 = arith.constant 0 : index
      %c0_52 = arith.constant 0 : index
      %70 = vector.load %arg15[%c0_51, %c0_52] : memref<2x128xf32, #tpu.memory_space<vmem>>, vector<2x128xf32>
      tpu.vector_store %arg15[%c0_51, %c0_52], %69 {strides = array<i32>} : memref<2x128xf32, #tpu.memory_space<vmem>>, vector<2x128xf32>,
      %c0_53 = arith.constant 0 : index
      %c0_54 = arith.constant 0 : index
      %71 = vector.load %arg9[%c0_53, %c0_54] : memref<2x128xf32, #tpu.memory_space<vmem>>, vector<2x128xf32>
      %c0_55 = arith.constant 0 : index
      %c0_56 = arith.constant 0 : index
      %72 = vector.load %arg16[%c0_55, %c0_56] : memref<2x128xf32, #tpu.memory_space<vmem>>, vector<2x128xf32>
      tpu.vector_store %arg16[%c0_55, %c0_56], %71 {strides = array<i32>} : memref<2x128xf32, #tpu.memory_space<vmem>>, vector<2x128xf32>,
    } else {
    }
    %c0 = arith.constant 0 : index
    %c0_1 = arith.constant 0 : index
    %c0_2 = arith.constant 0 : index
    %3 = vector.load %arg1[%c0, %c0_1, %c0_2] : memref<1x2x16xbf16, #tpu.memory_space<vmem>>, vector<1x2x16xbf16>
    %4 = vector.shape_cast %3 : vector<1x2x16xbf16> to vector<2x16xbf16>
    %c0_3 = arith.constant 0 : index
    %c0_4 = arith.constant 0 : index
    %c0_5 = arith.constant 0 : index
    %5 = vector.load %arg2[%c0_3, %c0_4, %c0_5] : memref<1x2x16xbf16, #tpu.memory_space<vmem>>, vector<1x2x16xbf16>
    %6 = vector.shape_cast %5 : vector<1x2x16xbf16> to vector<2x16xbf16>
    %7 = vector.shape_cast %4 : vector<2x16xbf16> to vector<2x16x1xbf16>
    %8 = vector.shape_cast %6 : vector<2x16xbf16> to vector<2x1x16xbf16>
    %9 = vector.broadcast %7 : vector<2x16x1xbf16> to vector<2x16x16xbf16>
    %10 = vector.broadcast %8 : vector<2x1x16xbf16> to vector<2x16x16xbf16>
    %11 = arith.mulf %9, %10 : vector<2x16x16xbf16>
    %12 = vector.shape_cast %11 : vector<2x16x16xbf16> to vector<2x256xbf16>
    %c0_6 = arith.constant 0 : index
    %c0_7 = arith.constant 0 : index
    %13 = vector.load %arg3[%c0_6, %c0_7] : memref<256x128xbf16, #tpu.memory_space<vmem>>, vector<256x128xbf16>
    %cst = arith.constant dense<0.000000e+00> : vector<2x128xf32>
    %14 = tpu.matmul %12, %13, %cst {dimension_numbers = #tpu.dot_dimension_numbers<[1], [0], [0], [1], [0, 0, 1, 1], [], []>} : vector<2x256xbf16>, vector<256x128xbf16>, vector<2x128xf32> -> vector<2x128xf32>
    %c0_8 = arith.constant 0 : index
    %c0_9 = arith.constant 0 : index
    %15 = vector.load %arg4[%c0_8, %c0_9] : memref<1x128xf32, #tpu.memory_space<vmem>>, vector<1x128xf32>
    %16 = vector.broadcast %15 : vector<1x128xf32> to vector<2x128xf32>
    %17 = arith.addf %14, %16 : vector<2x128xf32>
    %c0_10 = arith.constant 0 : index
    %c0_11 = arith.constant 0 : index
    %18 = vector.load %arg5[%c0_10, %c0_11] : memref<1x128xf32, #tpu.memory_space<vmem>>, vector<1x128xf32>
    %c0_12 = arith.constant 0 : index
    %c0_13 = arith.constant 0 : index
    %19 = vector.load %arg6[%c0_12, %c0_13] : memref<1x128xf32, #tpu.memory_space<vmem>>, vector<1x128xf32>
    %c0_14 = arith.constant 0 : index
    %c0_15 = arith.constant 0 : index
    %20 = vector.load %arg14[%c0_14, %c0_15] : memref<2x128xf32, #tpu.memory_space<vmem>>, vector<2x128xf32>
    %c0_16 = arith.constant 0 : index
    %c0_17 = arith.constant 0 : index
    %21 = vector.load %arg15[%c0_16, %c0_17] : memref<2x128xf32, #tpu.memory_space<vmem>>, vector<2x128xf32>
    %c0_18 = arith.constant 0 : index
    %c0_19 = arith.constant 0 : index
    %22 = vector.load %arg16[%c0_18, %c0_19] : memref<2x128xf32, #tpu.memory_space<vmem>>, vector<2x128xf32>
    %23 = vector.broadcast %19 : vector<1x128xf32> to vector<2x128xf32>
    %24 = arith.mulf %23, %22 : vector<2x128xf32>
    %cst_20 = arith.constant 1.000000e+00 : f32
    %25 = vector.broadcast %cst_20 : f32 to vector<1x128xf32>
    %26 = arith.subf %25, %19 : vector<1x128xf32>
    %27 = vector.broadcast %26 : vector<1x128xf32> to vector<2x128xf32>
    %28 = arith.mulf %27, %21 : vector<2x128xf32>
    %29 = arith.addf %24, %28 : vector<2x128xf32>
    %cst_21 = arith.constant 1.800000e+00 : f32
    %30 = vector.broadcast %cst_21 : f32 to vector<2x128xf32>
    %31 = arith.mulf %30, %29 : vector<2x128xf32>
    %cst_22 = arith.constant 0.00999999977 : f32
    %32 = vector.broadcast %cst_22 : f32 to vector<2x128xf32>
    %33 = arith.addf %32, %31 : vector<2x128xf32>
    %34 = vector.broadcast %18 : vector<1x128xf32> to vector<2x128xf32>
    %35 = arith.mulf %20, %34 : vector<2x128xf32>
    %cst_23 = arith.constant 1.000000e+00 : f32
    %36 = vector.broadcast %cst_23 : f32 to vector<1x128xf32>
    %37 = arith.subf %36, %18 : vector<1x128xf32>
    %cst_24 = arith.constant 1.000000e+00 : f32
    %38 = vector.broadcast %cst_24 : f32 to vector<1x128xf32>
    %39 = arith.mulf %37, %38 : vector<1x128xf32>
    %40 = vector.broadcast %39 : vector<1x128xf32> to vector<2x128xf32>
    %41 = arith.mulf %40, %17 : vector<2x128xf32>
    %42 = arith.addf %35, %41 : vector<2x128xf32>
    %43 = arith.mulf %33, %21 : vector<2x128xf32>
    %cst_25 = arith.constant 1.000000e+00 : f32
    %44 = vector.broadcast %cst_25 : f32 to vector<2x128xf32>
    %45 = arith.mulf %43, %44 : vector<2x128xf32>
    %46 = arith.subf %42, %45 : vector<2x128xf32>
    %47 = arith.subf %46, %33 : vector<2x128xf32>
    %cst_26 = arith.constant 0.000000e+00 : f32
    %48 = vector.broadcast %cst_26 : f32 to vector<2x128xf32>
    %49 = arith.cmpf ogt, %47, %48 : vector<2x128xf32>
    %50 = arith.extui %49 : vector<2x128xi1> to vector<2x128xi32>
    %51 = arith.sitofp %50 : vector<2x128xi32> to vector<2x128xf32>
    %c0_27 = arith.constant 0 : index
    %c0_28 = arith.constant 0 : index
    %52 = vector.load %arg14[%c0_27, %c0_28] : memref<2x128xf32, #tpu.memory_space<vmem>>, vector<2x128xf32>
    tpu.vector_store %arg14[%c0_27, %c0_28], %46 {strides = array<i32>} : memref<2x128xf32, #tpu.memory_space<vmem>>, vector<2x128xf32>,
    %c0_29 = arith.constant 0 : index
    %c0_30 = arith.constant 0 : index
    %53 = vector.load %arg15[%c0_29, %c0_30] : memref<2x128xf32, #tpu.memory_space<vmem>>, vector<2x128xf32>
    tpu.vector_store %arg15[%c0_29, %c0_30], %51 {strides = array<i32>} : memref<2x128xf32, #tpu.memory_space<vmem>>, vector<2x128xf32>,
    %c0_31 = arith.constant 0 : index
    %c0_32 = arith.constant 0 : index
    %54 = vector.load %arg16[%c0_31, %c0_32] : memref<2x128xf32, #tpu.memory_space<vmem>>, vector<2x128xf32>
    tpu.vector_store %arg16[%c0_31, %c0_32], %29 {strides = array<i32>} : memref<2x128xf32, #tpu.memory_space<vmem>>, vector<2x128xf32>,
    %c0_33 = arith.constant 0 : index
    %c0_34 = arith.constant 0 : index
    %c0_35 = arith.constant 0 : index
    %55 = vector.load %arg10[%c0_33, %c0_34, %c0_35] : memref<1x2x128xf32, #tpu.memory_space<vmem>>, vector<1x2x128xf32>
    %56 = vector.shape_cast %55 : vector<1x2x128xf32> to vector<2x128xf32>
    %57 = vector.shape_cast %46 : vector<2x128xf32> to vector<1x2x128xf32>
    tpu.vector_store %arg10[%c0_33, %c0_34, %c0_35], %57 {strides = array<i32>} : memref<1x2x128xf32, #tpu.memory_space<vmem>>, vector<1x2x128xf32>,
    %c0_36 = arith.constant 0 : index
    %c0_37 = arith.constant 0 : index
    %c0_38 = arith.constant 0 : index
    %58 = vector.load %arg11[%c0_36, %c0_37, %c0_38] : memref<1x2x128xf32, #tpu.memory_space<vmem>>, vector<1x2x128xf32>
    %59 = vector.shape_cast %58 : vector<1x2x128xf32> to vector<2x128xf32>
    %60 = vector.shape_cast %51 : vector<2x128xf32> to vector<1x2x128xf32>
    tpu.vector_store %arg11[%c0_36, %c0_37, %c0_38], %60 {strides = array<i32>} : memref<1x2x128xf32, #tpu.memory_space<vmem>>, vector<1x2x128xf32>,
    %c0_39 = arith.constant 0 : index
    %c0_40 = arith.constant 0 : index
    %c0_41 = arith.constant 0 : index
    %61 = vector.load %arg12[%c0_39, %c0_40, %c0_41] : memref<1x2x128xf32, #tpu.memory_space<vmem>>, vector<1x2x128xf32>
    %62 = vector.shape_cast %61 : vector<1x2x128xf32> to vector<2x128xf32>
    %63 = vector.shape_cast %33 : vector<2x128xf32> to vector<1x2x128xf32>
    tpu.vector_store %arg12[%c0_39, %c0_40, %c0_41], %63 {strides = array<i32>} : memref<1x2x128xf32, #tpu.memory_space<vmem>>, vector<1x2x128xf32>,
    %c0_42 = arith.constant 0 : index
    %c0_43 = arith.constant 0 : index
    %c0_44 = arith.constant 0 : index
    %64 = vector.load %arg13[%c0_42, %c0_43, %c0_44] : memref<1x2x128xf32, #tpu.memory_space<vmem>>, vector<1x2x128xf32>
    %65 = vector.shape_cast %64 : vector<1x2x128xf32> to vector<2x128xf32>
    %66 = vector.shape_cast %29 : vector<2x128xf32> to vector<1x2x128xf32>
    tpu.vector_store %arg13[%c0_42, %c0_43, %c0_44], %66 {strides = array<i32>} : memref<1x2x128xf32, #tpu.memory_space<vmem>>, vector<1x2x128xf32>,
    return
  }
  func.func @transform_0(%arg0: i32) -> (i32, i32, i32) {
    %c0_i32 = arith.constant 0 : i32
    %c0_i32_0 = arith.constant 0 : i32
    %c0_i32_1 = arith.constant 0 : i32
    return %arg0, %c0_i32, %c0_i32_0 : i32, i32, i32
  }
  func.func @transform_1(%arg0: i32) -> (i32, i32, i32) {
    %c0_i32 = arith.constant 0 : i32
    %c0_i32_0 = arith.constant 0 : i32
    %c0_i32_1 = arith.constant 0 : i32
    return %arg0, %c0_i32, %c0_i32_0 : i32, i32, i32
  }
  func.func @transform_2(%arg0: i32) -> (i32, i32) {
    %c0_i32 = arith.constant 0 : i32
    %c0_i32_0 = arith.constant 0 : i32
    %c0_i32_1 = arith.constant 0 : i32
    return %c0_i32, %c0_i32_0 : i32, i32
  }
  func.func @transform_3(%arg0: i32) -> (i32, i32) {
    %c0_i32 = arith.constant 0 : i32
    %c0_i32_0 = arith.constant 0 : i32
    %c0_i32_1 = arith.constant 0 : i32
    return %c0_i32, %c0_i32_0 : i32, i32
  }
  func.func @transform_4(%arg0: i32) -> (i32, i32) {
    %c0_i32 = arith.constant 0 : i32
    %c0_i32_0 = arith.constant 0 : i32
    %c0_i32_1 = arith.constant 0 : i32
    return %c0_i32, %c0_i32_0 : i32, i32
  }
  func.func @transform_5(%arg0: i32) -> (i32, i32) {
    %c0_i32 = arith.constant 0 : i32
    %c0_i32_0 = arith.constant 0 : i32
    %c0_i32_1 = arith.constant 0 : i32
    return %c0_i32, %c0_i32_0 : i32, i32
  }
  func.func @transform_6(%arg0: i32) -> (i32, i32) {
    %c0_i32 = arith.constant 0 : i32
    %c0_i32_0 = arith.constant 0 : i32
    %c0_i32_1 = arith.constant 0 : i32
    return %c0_i32, %c0_i32_0 : i32, i32
  }
  func.func @transform_7(%arg0: i32) -> (i32, i32) {
    %c0_i32 = arith.constant 0 : i32
    %c0_i32_0 = arith.constant 0 : i32
    %c0_i32_1 = arith.constant 0 : i32
    return %c0_i32, %c0_i32_0 : i32, i32
  }
  func.func @transform_8(%arg0: i32) -> (i32, i32) {
    %c0_i32 = arith.constant 0 : i32
    %c0_i32_0 = arith.constant 0 : i32
    %c0_i32_1 = arith.constant 0 : i32
    return %c0_i32, %c0_i32_0 : i32, i32
  }
  func.func @transform_9(%arg0: i32) -> (i32, i32, i32) {
    %c0_i32 = arith.constant 0 : i32
    %c0_i32_0 = arith.constant 0 : i32
    %c0_i32_1 = arith.constant 0 : i32
    return %arg0, %c0_i32, %c0_i32_0 : i32, i32, i32
  }
  func.func @transform_10(%arg0: i32) -> (i32, i32, i32) {
    %c0_i32 = arith.constant 0 : i32
    %c0_i32_0 = arith.constant 0 : i32
    %c0_i32_1 = arith.constant 0 : i32
    return %arg0, %c0_i32, %c0_i32_0 : i32, i32, i32
  }
  func.func @transform_11(%arg0: i32) -> (i32, i32, i32) {
    %c0_i32 = arith.constant 0 : i32
    %c0_i32_0 = arith.constant 0 : i32
    %c0_i32_1 = arith.constant 0 : i32
    return %arg0, %c0_i32, %c0_i32_0 : i32, i32, i32
  }
  func.func @transform_12(%arg0: i32) -> (i32, i32, i32) {
    %c0_i32 = arith.constant 0 : i32
    %c0_i32_0 = arith.constant 0 : i32
    %c0_i32_1 = arith.constant 0 : i32
    return %arg0, %c0_i32, %c0_i32_0 : i32, i32, i32
  }
}

</mosaic_0001>

<llo_original>
// kernel: tpu_custom_call.1
$region0: #{tpu_custom_call.1}
  #allocation0 [shape = 'u32[]', space=smem, size = 0x4, offset = 0x4, fixed_abs, tag = 'smem constant byte address 0x4 - core index']
  #allocation1 [shape = 'u32[144,128]{1,0:T(1,128)}', space=vmem, size = 0x12000, scoped, tag = 'internal scratch']
  #allocation2 [shape = 'f32[2,128]{1,0:T(2,128)}', space=vmem, size = 0x400, scoped, tag = 'scratch operand']
  #allocation3 [shape = 'f32[2,128]{1,0:T(2,128)}', space=vmem, size = 0x400, scoped, tag = 'scratch operand']
  #allocation4 [shape = 'f32[2,128]{1,0:T(2,128)}', space=vmem, size = 0x400, scoped, tag = 'scratch operand']
  %s0 = inlined_call_operand.hbm [shape: bf16[8,2,16], index: 0, kind: input, shape index: {}]
  %s1 = inlined_call_operand.hbm [shape: bf16[8,2,16], index: 1, kind: input, shape index: {}]
  %s2 = inlined_call_operand.hbm [shape: bf16[256,128], index: 2, kind: input, shape index: {}]
  %s3 = inlined_call_operand.vmem [shape: f32[1,128], index: 3, kind: input, shape index: {}]
  %s4 = inlined_call_operand.vmem [shape: f32[1,128], index: 4, kind: input, shape index: {}]
  %s5 = inlined_call_operand.vmem [shape: f32[1,128], index: 5, kind: input, shape index: {}]
  %s6 = inlined_call_operand.vmem [shape: f32[2,128], index: 6, kind: input, shape index: {}]
  %s7 = inlined_call_operand.vmem [shape: f32[2,128], index: 7, kind: input, shape index: {}]
  %s8 = inlined_call_operand.vmem [shape: f32[2,128], index: 8, kind: input, shape index: {}]
  %s9 = inlined_call_operand.hbm [shape: f32[8,2,128], index: 9, kind: output, shape index: {0}]
  %s10 = inlined_call_operand.hbm [shape: f32[8,2,128], index: 10, kind: output, shape index: {1}]
  %s11 = inlined_call_operand.hbm [shape: f32[8,2,128], index: 11, kind: output, shape index: {2}]
  %s12 = inlined_call_operand.hbm [shape: f32[8,2,128], index: 12, kind: output, shape index: {3}]
  %13 = xla_tuple %s9, %s10, %s11, %s12
  %s14 = sld [smem:[#allocation0]]
  $region109: #{tpu_custom_call.1} parent=0
    _
  %s16 = ssub.s32 1, %s14
  %s17 = scalar_select 0, %s16, %s14
  $region1: #{tpu_custom_call.1} parent=0
    #allocation5 [shape = 'u8[1024]{0}', space=vmem, size = 0x400, scoped, tag = 'input window, operand 0']
    #allocation6 [shape = 's32[2]{0}', space=sflag, size = 0x8, scoped, tag = 'scoped memory for tpu_custom_call.1']
    #allocation7 [shape = 's32[2]{0}', space=sflag, size = 0x8, scoped, tag = 'scoped memory for tpu_custom_call.1']
    #allocation8 [shape = 'u8[1024]{0}', space=vmem, size = 0x400, scoped, tag = 'input window, operand 1']
    #allocation9 [shape = 's32[2]{0}', space=sflag, size = 0x8, scoped, tag = 'scoped memory for tpu_custom_call.1']
    #allocation10 [shape = 'u8[65536]{0}', space=vmem, size = 0x10000, scoped, tag = 'input window, operand 2, single buffered']
    #allocation11 [shape = 'u8[2048]{0}', space=vmem, size = 0x800, scoped, tag = 'output window, operand 0']
    #allocation12 [shape = 'u8[2048]{0}', space=vmem, size = 0x800, scoped, tag = 'output window, operand 1']
    #allocation13 [shape = 's32[2]{0}', space=sflag, size = 0x8, scoped, tag = 'scoped memory for tpu_custom_call.1']
    #allocation14 [shape = 'u8[2048]{0}', space=vmem, size = 0x800, scoped, tag = 'output window, operand 2']
    #allocation15 [shape = 'u8[2048]{0}', space=vmem, size = 0x800, scoped, tag = 'output window, operand 3']
    #allocation16 [shape = 's32[2]{0}', space=sflag, size = 0x8, scoped, tag = 'scoped memory for tpu_custom_call.1']
    %18 = vsyncpa [#allocation6], 0
    %s19 = scalar_lea.sflag [#allocation6], 1
    %20 = vsyncpa %s19, 0
    %21 = vsyncpa [#allocation9], 0
    %s22 = scalar_lea.sflag [#allocation9], 1
    %23 = vsyncpa %s22, 0
    %24 = vsyncpa [#allocation7], 0
    %s25 = scalar_lea.sflag [#allocation7], 1
    %26 = vsyncpa %s25, 0
    %27 = vsyncpa [#allocation13], 0
    %s28 = scalar_lea.sflag [#allocation13], 1
    %29 = vsyncpa %s28, 0
    %30 = vsyncpa [#allocation16], 0
    %s31 = scalar_lea.sflag [#allocation16], 1
    %32 = vsyncpa %s31, 0
    loop: start=0, step=1, limit=10
    $region2: #{tpu_custom_call.1} parent=1 // loop_pre_header
      _
    $region3: #{tpu_custom_call.1} parent=1 // loop_header
      %s34 = sphi 0, %s38
      %p35 = scmp.ge.s32.totalorder %s34, 10
      %s44 = sphi 0, %s46
      %s47 = sphi 0, %s44
      %s48 = sphi 0, %s47
      %s64 = sphi 0, %s48
      %s70 = sphi 0, %s72
      %s73 = sphi 0, %s70
      %s74 = sphi 0, %s73
      %s90 = sphi 0, %s74
      %s94 = sphi 0, %s94
      %s96 = sphi 0, %s94
      %s97 = sphi 0, %s96
      %s111 = sphi 0, %s97
      %s115 = sphi 0, %s115
      %s117 = sphi 0, %s115
      %s118 = sphi 0, %s117
      %s132 = sphi 0, %s118
      %s136 = sphi 0, %s136
      %s138 = sphi 0, %s136
      %s139 = sphi 0, %s138
      %s153 = sphi 0, %s139
      %s157 = sphi 0, %s157
      %s159 = sphi 0, %s157
      %s160 = sphi 0, %s159
      %s174 = sphi 0, %s160
      %s178 = sphi 0, %s178
      %s180 = sphi 0, %s178
      %s181 = sphi 0, %s180
      %s195 = sphi 0, %s181
      %s199 = sphi 0, %s199
      %s201 = sphi 0, %s199
      %s202 = sphi 0, %s201
      %s216 = sphi 0, %s202
      %s220 = sphi 0, %s220
      %s222 = sphi 0, %s220
      %s223 = sphi 0, %s222
      %s237 = sphi 0, %s223
      %s243 = sphi 0, %s245
      %s246 = sphi 0, %s243
      %s247 = sphi 0, %s246
      %s263 = sphi 0, %s247
      %s269 = sphi 0, %s271
      %s272 = sphi 0, %s269
      %s273 = sphi 0, %s272
      %s289 = sphi 0, %s273
      %s295 = sphi 0, %s297
      %s298 = sphi 0, %s295
      %s299 = sphi 0, %s298
      %s315 = sphi 0, %s299
      %s321 = sphi 0, %s323
      %s324 = sphi 0, %s321
      %s325 = sphi 0, %s324
      %s341 = sphi 0, %s325
    $region4: #{tpu_custom_call.1} parent=1 // loop_header_branch
      %37 = sbr.rel (%p35) target = $region8
    $region5: #{tpu_custom_call.1} parent=1 // loop_body
      %s39 = ssub.s32 %s34, 1
      %s40 = ssub.s32 %s34, 2
      %s41 = sadd.s32 %s34, 1
      %s42 = ssub.s32 %s34, %s41
      %p43 = scmp.eq.s32.totalorder %s42, 0
      %s45 = sadd.s32 %s44, 1
      %s46 = scalar_select %p43, %s44, %s45
      %p49 = pneg %p43
      %p50 = scmp.eq.s32.totalorder %s34, 7
      %p51 = por %p49, %p50
      %p52 = scmp.ne.s32.totalorder %s44, %s47
      %p53 = scmp.eq.s32.totalorder %s34, 0
      %p54 = por %p52, %p53
      %p55 = scmp.ne.s32.totalorder %s44, %s47
      %p56 = scmp.eq.s32.totalorder %s39, 7
      %p57 = por %p55, %p56
      %p58 = scmp.ne.s32.totalorder %s47, %s48
      %p59 = scmp.eq.s32.totalorder %s39, 0
      %p60 = por %p58, %p59
      %p61 = scmp.ne.s32.totalorder %s47, %s48
      %p62 = scmp.eq.s32.totalorder %s40, 7
      %p63 = por %p61, %p62
      %p65 = scmp.ne.s32.totalorder %s48, %s64
      %p66 = scmp.eq.s32.totalorder %s40, 0
      %p67 = por %p65, %p66
      %s68 = ssub.s32 %s34, %s41
      %p69 = scmp.eq.s32.totalorder %s68, 0
      %s71 = sadd.s32 %s70, 1
      %s72 = scalar_select %p69, %s70, %s71
      %p75 = pneg %p69
      %p76 = scmp.eq.s32.totalorder %s34, 7
      %p77 = por %p75, %p76
      %p78 = scmp.ne.s32.totalorder %s70, %s73
      %p79 = scmp.eq.s32.totalorder %s34, 0
      %p80 = por %p78, %p79
      %p81 = scmp.ne.s32.totalorder %s70, %s73
      %p82 = scmp.eq.s32.totalorder %s39, 7
      %p83 = por %p81, %p82
      %p84 = scmp.ne.s32.totalorder %s73, %s74
      %p85 = scmp.eq.s32.totalorder %s39, 0
      %p86 = por %p84, %p85
      %p87 = scmp.ne.s32.totalorder %s73, %s74
      %p88 = scmp.eq.s32.totalorder %s40, 7
      %p89 = por %p87, %p88
      %p91 = scmp.ne.s32.totalorder %s74, %s90
      %p92 = scmp.eq.s32.totalorder %s40, 0
      %p93 = por %p91, %p92
      %s95 = sadd.s32 %s94, 1
      %p98 = scmp.eq.s32.totalorder %s34, 7
      %p99 = scmp.ne.s32.totalorder %s94, %s96
      %p100 = scmp.eq.s32.totalorder %s34, 0
      %p101 = por %p99, %p100
      %p102 = scmp.ne.s32.totalorder %s94, %s96
      %p103 = scmp.eq.s32.totalorder %s39, 7
      %p104 = por %p102, %p103
      %p105 = scmp.ne.s32.totalorder %s96, %s97
      %p106 = scmp.eq.s32.totalorder %s39, 0
      %p107 = por %p105, %p106
      %p108 = scmp.ne.s32.totalorder %s96, %s97
      %p109 = scmp.eq.s32.totalorder %s40, 7
      %p110 = por %p108, %p109
      %p112 = scmp.ne.s32.totalorder %s97, %s111
      %p113 = scmp.eq.s32.totalorder %s40, 0
      %p114 = por %p112, %p113
      %s116 = sadd.s32 %s115, 1
      %p119 = scmp.eq.s32.totalorder %s34, 7
      %p120 = scmp.ne.s32.totalorder %s115, %s117
      %p121 = scmp.eq.s32.totalorder %s34, 0
      %p122 = por %p120, %p121
      %p123 = scmp.ne.s32.totalorder %s115, %s117
      %p124 = scmp.eq.s32.totalorder %s39, 7
      %p125 = por %p123, %p124
      %p126 = scmp.ne.s32.totalorder %s117, %s118
      %p127 = scmp.eq.s32.totalorder %s39, 0
      %p128 = por %p126, %p127
      %p129 = scmp.ne.s32.totalorder %s117, %s118
      %p130 = scmp.eq.s32.totalorder %s40, 7
      %p131 = por %p129, %p130
      %p133 = scmp.ne.s32.totalorder %s118, %s132
      %p134 = scmp.eq.s32.totalorder %s40, 0
      %p135 = por %p133, %p134
      %s137 = sadd.s32 %s136, 1
      %p140 = scmp.eq.s32.totalorder %s34, 7
      %p141 = scmp.ne.s32.totalorder %s136, %s138
      %p142 = scmp.eq.s32.totalorder %s34, 0
      %p143 = por %p141, %p142
      %p144 = scmp.ne.s32.totalorder %s136, %s138
      %p145 = scmp.eq.s32.totalorder %s39, 7
      %p146 = por %p144, %p145
      %p147 = scmp.ne.s32.totalorder %s138, %s139
      %p148 = scmp.eq.s32.totalorder %s39, 0
      %p149 = por %p147, %p148
      %p150 = scmp.ne.s32.totalorder %s138, %s139
      %p151 = scmp.eq.s32.totalorder %s40, 7
      %p152 = por %p150, %p151
      %p154 = scmp.ne.s32.totalorder %s139, %s153
      %p155 = scmp.eq.s32.totalorder %s40, 0
      %p156 = por %p154, %p155
      %s158 = sadd.s32 %s157, 1
      %p161 = scmp.eq.s32.totalorder %s34, 7
      %p162 = scmp.ne.s32.totalorder %s157, %s159
      %p163 = scmp.eq.s32.totalorder %s34, 0
      %p164 = por %p162, %p163
      %p165 = scmp.ne.s32.totalorder %s157, %s159
      %p166 = scmp.eq.s32.totalorder %s39, 7
      %p167 = por %p165, %p166
      %p168 = scmp.ne.s32.totalorder %s159, %s160
      %p169 = scmp.eq.s32.totalorder %s39, 0
      %p170 = por %p168, %p169
      %p171 = scmp.ne.s32.totalorder %s159, %s160
      %p172 = scmp.eq.s32.totalorder %s40, 7
      %p173 = por %p171, %p172
      %p175 = scmp.ne.s32.totalorder %s160, %s174
      %p176 = scmp.eq.s32.totalorder %s40, 0
      %p177 = por %p175, %p176
      %s179 = sadd.s32 %s178, 1
      %p182 = scmp.eq.s32.totalorder %s34, 7
      %p183 = scmp.ne.s32.totalorder %s178, %s180
      %p184 = scmp.eq.s32.totalorder %s34, 0
      %p185 = por %p183, %p184
      %p186 = scmp.ne.s32.totalorder %s178, %s180
      %p187 = scmp.eq.s32.totalorder %s39, 7
      %p188 = por %p186, %p187
      %p189 = scmp.ne.s32.totalorder %s180, %s181
      %p190 = scmp.eq.s32.totalorder %s39, 0
      %p191 = por %p189, %p190
      %p192 = scmp.ne.s32.totalorder %s180, %s181
      %p193 = scmp.eq.s32.totalorder %s40, 7
      %p194 = por %p192, %p193
      %p196 = scmp.ne.s32.totalorder %s181, %s195
      %p197 = scmp.eq.s32.totalorder %s40, 0
      %p198 = por %p196, %p197
      %s200 = sadd.s32 %s199, 1
      %p203 = scmp.eq.s32.totalorder %s34, 7
      %p204 = scmp.ne.s32.totalorder %s199, %s201
      %p205 = scmp.eq.s32.totalorder %s34, 0
      %p206 = por %p204, %p205
      %p207 = scmp.ne.s32.totalorder %s199, %s201
      %p208 = scmp.eq.s32.totalorder %s39, 7
      %p209 = por %p207, %p208
      %p210 = scmp.ne.s32.totalorder %s201, %s202
      %p211 = scmp.eq.s32.totalorder %s39, 0
      %p212 = por %p210, %p211
      %p213 = scmp.ne.s32.totalorder %s201, %s202
      %p214 = scmp.eq.s32.totalorder %s40, 7
      %p215 = por %p213, %p214
      %p217 = scmp.ne.s32.totalorder %s202, %s216
      %p218 = scmp.eq.s32.totalorder %s40, 0
      %p219 = por %p217, %p218
      %s221 = sadd.s32 %s220, 1
      %p224 = scmp.eq.s32.totalorder %s34, 7
      %p225 = scmp.ne.s32.totalorder %s220, %s222
      %p226 = scmp.eq.s32.totalorder %s34, 0
      %p227 = por %p225, %p226
      %p228 = scmp.ne.s32.totalorder %s220, %s222
      %p229 = scmp.eq.s32.totalorder %s39, 7
      %p230 = por %p228, %p229
      %p231 = scmp.ne.s32.totalorder %s222, %s223
      %p232 = scmp.eq.s32.totalorder %s39, 0
      %p233 = por %p231, %p232
      %p234 = scmp.ne.s32.totalorder %s222, %s223
      %p235 = scmp.eq.s32.totalorder %s40, 7
      %p236 = por %p234, %p235
      %p238 = scmp.ne.s32.totalorder %s223, %s237
      %p239 = scmp.eq.s32.totalorder %s40, 0
      %p240 = por %p238, %p239
      %s241 = ssub.s32 %s34, %s41
      %p242 = scmp.eq.s32.totalorder %s241, 0
      %s244 = sadd.s32 %s243, 1
      %s245 = scalar_select %p242, %s243, %s244
      %p248 = pneg %p242
      %p249 = scmp.eq.s32.totalorder %s34, 7
      %p250 = por %p248, %p249
      %p251 = scmp.ne.s32.totalorder %s243, %s246
      %p252 = scmp.eq.s32.totalorder %s34, 0
      %p253 = por %p251, %p252
      %p254 = scmp.ne.s32.totalorder %s243, %s246
      %p255 = scmp.eq.s32.totalorder %s39, 7
      %p256 = por %p254, %p255
      %p257 = scmp.ne.s32.totalorder %s246, %s247
      %p258 = scmp.eq.s32.totalorder %s39, 0
      %p259 = por %p257, %p258
      %p260 = scmp.ne.s32.totalorder %s246, %s247
      %p261 = scmp.eq.s32.totalorder %s40, 7
      %p262 = por %p260, %p261
      %p264 = scmp.ne.s32.totalorder %s247, %s263
      %p265 = scmp.eq.s32.totalorder %s40, 0
      %p266 = por %p264, %p265
      %s267 = ssub.s32 %s34, %s41
      %p268 = scmp.eq.s32.totalorder %s267, 0
      %s270 = sadd.s32 %s269, 1
      %s271 = scalar_select %p268, %s269, %s270
      %p274 = pneg %p268
      %p275 = scmp.eq.s32.totalorder %s34, 7
      %p276 = por %p274, %p275
      %p277 = scmp.ne.s32.totalorder %s269, %s272
      %p278 = scmp.eq.s32.totalorder %s34, 0
      %p279 = por %p277, %p278
      %p280 = scmp.ne.s32.totalorder %s269, %s272
      %p281 = scmp.eq.s32.totalorder %s39, 7
      %p282 = por %p280, %p281
      %p283 = scmp.ne.s32.totalorder %s272, %s273
      %p284 = scmp.eq.s32.totalorder %s39, 0
      %p285 = por %p283, %p284
      %p286 = scmp.ne.s32.totalorder %s272, %s273
      %p287 = scmp.eq.s32.totalorder %s40, 7
      %p288 = por %p286, %p287
      %p290 = scmp.ne.s32.totalorder %s273, %s289
      %p291 = scmp.eq.s32.totalorder %s40, 0
      %p292 = por %p290, %p291
      %s293 = ssub.s32 %s34, %s41
      %p294 = scmp.eq.s32.totalorder %s293, 0
      %s296 = sadd.s32 %s295, 1
      %s297 = scalar_select %p294, %s295, %s296
      %p300 = pneg %p294
      %p301 = scmp.eq.s32.totalorder %s34, 7
      %p302 = por %p300, %p301
      %p303 = scmp.ne.s32.totalorder %s295, %s298
      %p304 = scmp.eq.s32.totalorder %s34, 0
      %p305 = por %p303, %p304
      %p306 = scmp.ne.s32.totalorder %s295, %s298
      %p307 = scmp.eq.s32.totalorder %s39, 7
      %p308 = por %p306, %p307
      %p309 = scmp.ne.s32.totalorder %s298, %s299
      %p310 = scmp.eq.s32.totalorder %s39, 0
      %p311 = por %p309, %p310
      %p312 = scmp.ne.s32.totalorder %s298, %s299
      %p313 = scmp.eq.s32.totalorder %s40, 7
      %p314 = por %p312, %p313
      %p316 = scmp.ne.s32.totalorder %s299, %s315
      %p317 = scmp.eq.s32.totalorder %s40, 0
      %p318 = por %p316, %p317
      %s319 = ssub.s32 %s34, %s41
      %p320 = scmp.eq.s32.totalorder %s319, 0
      %s322 = sadd.s32 %s321, 1
      %s323 = scalar_select %p320, %s321, %s322
      %p326 = pneg %p320
      %p327 = scmp.eq.s32.totalorder %s34, 7
      %p328 = por %p326, %p327
      %p329 = scmp.ne.s32.totalorder %s321, %s324
      %p330 = scmp.eq.s32.totalorder %s34, 0
      %p331 = por %p329, %p330
      %p332 = scmp.ne.s32.totalorder %s321, %s324
      %p333 = scmp.eq.s32.totalorder %s39, 7
      %p334 = por %p332, %p333
      %p335 = scmp.ne.s32.totalorder %s324, %s325
      %p336 = scmp.eq.s32.totalorder %s39, 0
      %p337 = por %p335, %p336
      %p338 = scmp.ne.s32.totalorder %s324, %s325
      %p339 = scmp.eq.s32.totalorder %s40, 7
      %p340 = por %p338, %p339
      %p342 = scmp.ne.s32.totalorder %s325, %s341
      %p343 = scmp.eq.s32.totalorder %s40, 0
      %p344 = por %p342, %p343
      %p345 = scmp.le.s32.totalorder 1, %s34
      %p346 = scmp.lt.s32.totalorder %s34, 9
      %p347 = pnand %p345, %p346
      %p348 = pneg %p347
      // Predicated region
      $region9: #{tpu_custom_call.1} parent=5 // pred_check
        _
      $region10: #{tpu_custom_call.1} parent=5 // pred_check_branch
        %350 = sbr.rel (%p347) target = $region12
      $region11: #{tpu_custom_call.1} parent=5 // pred_region
        %s351 = ssub.s32 %s34, 1
        // Predicated region
        $region13: #{tpu_custom_call.1} parent=11 // pred_check
          %p352 = pneg %p107
        $region14: #{tpu_custom_call.1} parent=11 // pred_check_branch
          %354 = sbr.rel (%p352) target = $region16
        $region15: #{tpu_custom_call.1} parent=11 // pred_region
          %s356 = ssub.s32 2048, 2048
          %357 = vsyncadd [#allocation9], %s356
          %s358 = sshll.u32 [#allocation10], 4
          %s359 = int_to_ptr.vmem [resolvable:$true] %s358
          %364 = dma.hbm_to_vmem [thread:$0]  %s2, 2048, %s359, [#allocation9], 64, 64, 4
        $region16: #{tpu_custom_call.1} parent=11 // pred_fallthru
          _
        // Predicated region
        $region17: #{tpu_custom_call.1} parent=11 // pred_check
          %p365 = pneg %p128
        $region18: #{tpu_custom_call.1} parent=11 // pred_check_branch
          %367 = sbr.rel (%p365) target = $region20
        $region19: #{tpu_custom_call.1} parent=11 // pred_region
          _
        $region20: #{tpu_custom_call.1} parent=11 // pred_fallthru
          _
        // Predicated region
        $region21: #{tpu_custom_call.1} parent=11 // pred_check
          %p368 = pneg %p149
        $region22: #{tpu_custom_call.1} parent=11 // pred_check_branch
          %370 = sbr.rel (%p368) target = $region24
        $region23: #{tpu_custom_call.1} parent=11 // pred_region
          _
        $region24: #{tpu_custom_call.1} parent=11 // pred_fallthru
          _
        // Predicated region
        $region25: #{tpu_custom_call.1} parent=11 // pred_check
          %p371 = pneg %p170
        $region26: #{tpu_custom_call.1} parent=11 // pred_check_branch
          %373 = sbr.rel (%p371) target = $region28
        $region27: #{tpu_custom_call.1} parent=11 // pred_region
          _
        $region28: #{tpu_custom_call.1} parent=11 // pred_fallthru
          _
        // Predicated region
        $region29: #{tpu_custom_call.1} parent=11 // pred_check
          %p374 = pneg %p191
        $region30: #{tpu_custom_call.1} parent=11 // pred_check_branch
          %376 = sbr.rel (%p374) target = $region32
        $region31: #{tpu_custom_call.1} parent=11 // pred_region
          _
        $region32: #{tpu_custom_call.1} parent=11 // pred_fallthru
          _
        // Predicated region
        $region33: #{tpu_custom_call.1} parent=11 // pred_check
          %p377 = pneg %p212
        $region34: #{tpu_custom_call.1} parent=11 // pred_check_branch
          %379 = sbr.rel (%p377) target = $region36
        $region35: #{tpu_custom_call.1} parent=11 // pred_region
          _
        $region36: #{tpu_custom_call.1} parent=11 // pred_fallthru
          _
        // Predicated region
        $region37: #{tpu_custom_call.1} parent=11 // pred_check
          %p380 = pneg %p233
        $region38: #{tpu_custom_call.1} parent=11 // pred_check_branch
          %382 = sbr.rel (%p380) target = $region40
        $region39: #{tpu_custom_call.1} parent=11 // pred_region
          _
        $region40: #{tpu_custom_call.1} parent=11 // pred_fallthru
          _
      $region12: #{tpu_custom_call.1} parent=5 // pred_fallthru
        _
      %p383 = scmp.lt.s32.totalorder %s34, 8
      // Predicated region
      $region41: #{tpu_custom_call.1} parent=5 // pred_check
        %p384 = pneg %p383
      $region42: #{tpu_custom_call.1} parent=5 // pred_check_branch
        %386 = sbr.rel (%p384) target = $region44
      $region43: #{tpu_custom_call.1} parent=5 // pred_region
        // Predicated region
        $region45: #{tpu_custom_call.1} parent=43 // pred_check
          %p387 = pneg %p54
        $region46: #{tpu_custom_call.1} parent=43 // pred_check_branch
          %389 = sbr.rel (%p387) target = $region48
        $region47: #{tpu_custom_call.1} parent=43 // pred_region
          %s390 = sand.u32 %s44, 1
          %s391 = scalar_lea.sflag [#allocation6], %s390
          %s392 = sand.u32 %s44, 1
          %s393 = scalar_lea.vmem [#allocation5], %s392
          %s395 = ssub.s32 16, 16
          %396 = vsyncadd %s391, %s395
          %s397 = smul.addr %s34, 16
          %s398 = scalar_lea.hbm %s0, %s397
          %s400 = sshll.u32 %s393, 4
          %s401 = int_to_ptr.vmem [resolvable:$true] %s400
          %403 = dma.hbm_to_vmem [thread:$0]  %s398, 16, %s401, %s391
        $region48: #{tpu_custom_call.1} parent=43 // pred_fallthru
          _
        // Predicated region
        $region49: #{tpu_custom_call.1} parent=43 // pred_check
          %p404 = pneg %p80
        $region50: #{tpu_custom_call.1} parent=43 // pred_check_branch
          %406 = sbr.rel (%p404) target = $region52
        $region51: #{tpu_custom_call.1} parent=43 // pred_region
          %s407 = sand.u32 %s34, 1
          %s408 = scalar_lea.sflag [#allocation9], %s407
          %s409 = sand.u32 %s70, 1
          %s410 = scalar_lea.vmem [#allocation8], %s409
          %s412 = ssub.s32 16, 16
          %413 = vsyncadd %s408, %s412
          %s414 = smul.addr %s34, 16
          %s415 = scalar_lea.hbm %s1, %s414
          %s417 = sshll.u32 %s410, 4
          %s418 = int_to_ptr.vmem [resolvable:$true] %s417
          %420 = dma.hbm_to_vmem [thread:$0]  %s415, 16, %s418, %s408
        $region52: #{tpu_custom_call.1} parent=43 // pred_fallthru
          _
      $region44: #{tpu_custom_call.1} parent=5 // pred_fallthru
        _
      %p421 = scmp.le.s32.totalorder 1, %s34
      %p422 = scmp.lt.s32.totalorder %s34, 9
      %p423 = pnand %p421, %p422
      %p424 = pneg %p423
      // Predicated region
      $region53: #{tpu_custom_call.1} parent=5 // pred_check
        _
      $region54: #{tpu_custom_call.1} parent=5 // pred_check_branch
        %426 = sbr.rel (%p423) target = $region56
      $region55: #{tpu_custom_call.1} parent=5 // pred_region
        %s427 = ssub.s32 %s34, 1
        %s428 = sand.u32 %s47, 1
        %s429 = scalar_lea.sflag [#allocation6], %s428
        %s430 = sand.u32 %s47, 1
        %s431 = scalar_lea.vmem [#allocation5], %s430
        // Predicated region
        $region57: #{tpu_custom_call.1} parent=55 // pred_check
          %p432 = pneg %p60
        $region58: #{tpu_custom_call.1} parent=55 // pred_check_branch
          %434 = sbr.rel (%p432) target = $region60
        $region59: #{tpu_custom_call.1} parent=55 // pred_region
          %435 = dma.done %s429, 16
        $region60: #{tpu_custom_call.1} parent=55 // pred_fallthru
          _
        %s436 = sand.u32 %s39, 1
        %s437 = scalar_lea.sflag [#allocation9], %s436
        %s438 = sand.u32 %s73, 1
        %s439 = scalar_lea.vmem [#allocation8], %s438
        // Predicated region
        $region61: #{tpu_custom_call.1} parent=55 // pred_check
          %p440 = pneg %p86
        $region62: #{tpu_custom_call.1} parent=55 // pred_check_branch
          %442 = sbr.rel (%p440) target = $region64
        $region63: #{tpu_custom_call.1} parent=55 // pred_region
          %443 = dma.done %s437, 16
        $region64: #{tpu_custom_call.1} parent=55 // pred_fallthru
          _
        // Predicated region
        $region65: #{tpu_custom_call.1} parent=55 // pred_check
          %p444 = pneg %p107
        $region66: #{tpu_custom_call.1} parent=55 // pred_check_branch
          %446 = sbr.rel (%p444) target = $region68
        $region67: #{tpu_custom_call.1} parent=55 // pred_region
          %447 = dma.done [#allocation9], 2048
        $region68: #{tpu_custom_call.1} parent=55 // pred_fallthru
          _
        %s448 = sand.u32 %s47, 1
        %s449 = scalar_lea.sflag [#allocation6], %s448
        %s450 = sand.u32 %s47, 1
        %s451 = scalar_lea.vmem [#allocation5], %s450
        %p452 = pneg %p60
        %p453 = pneg %p57
        %s454 = sand.u32 %s39, 1
        %s455 = scalar_lea.sflag [#allocation9], %s454
        %s456 = sand.u32 %s73, 1
        %s457 = scalar_lea.vmem [#allocation8], %s456
        %p458 = pneg %p86
        %p459 = pneg %p83
        %p460 = pneg %p107
        %p461 = pneg %p104
        %p462 = pneg %p128
        %p463 = pneg %p125
        %p464 = pneg %p149
        %p465 = pneg %p146
        %p466 = pneg %p170
        %p467 = pneg %p167
        %p468 = pneg %p191
        %p469 = pneg %p188
        %p470 = pneg %p212
        %p471 = pneg %p209
        %p472 = pneg %p233
        %p473 = pneg %p230
        %p474 = pneg %p259
        %p475 = pneg %p256
        %s476 = sand.u32 %s246, 1
        %s477 = scalar_lea.sflag [#allocation7], %s476
        %s478 = sand.u32 %s246, 1
        %s479 = smul.addr %s478, 2
        %s480 = scalar_lea.vmem [#allocation11], %s479
        %p481 = pneg %p285
        %p482 = pneg %p282
        %s483 = sand.u32 %s39, 1
        %s484 = scalar_lea.sflag [#allocation13], %s483
        %s485 = sand.u32 %s272, 1
        %s486 = smul.addr %s485, 2
        %s487 = scalar_lea.vmem [#allocation12], %s486
        %p488 = pneg %p311
        %p489 = pneg %p308
        %s490 = sand.u32 %s39, 1
        %s491 = scalar_lea.sflag [#allocation13], %s490
        %s492 = sand.u32 %s298, 1
        %s493 = smul.addr %s492, 2
        %s494 = scalar_lea.vmem [#allocation14], %s493
        %p495 = pneg %p337
        %p496 = pneg %p334
        %s497 = sand.u32 %s324, 1
        %s498 = scalar_lea.sflag [#allocation16], %s497
        %s499 = sand.u32 %s324, 1
        %s500 = smul.addr %s499, 2
        %s501 = scalar_lea.vmem [#allocation15], %s500
        %p503 = scmp.eq.s32.totalorder %s39, 0
        // Predicated region
        $region69: #{tpu_custom_call.1} parent=55 // pred_check
          %p504 = pneg %p503
        $region70: #{tpu_custom_call.1} parent=55 // pred_check_branch
          %506 = sbr.rel (%p504) target = $region72
        $region71: #{tpu_custom_call.1} parent=55 // pred_region
          %v507 = vld [vmem:[%s6] sm:$0x3]
          %508 = vst [vmem:[#allocation2] sm:$0x3] %v507
          %v509 = vld [vmem:[%s7] sm:$0x3]
          %510 = vst [vmem:[#allocation3] sm:$0x3] %v509
          %v511 = vld [vmem:[%s8] sm:$0x3]
          %512 = vst [vmem:[#allocation4] sm:$0x3] %v511
        $region72: #{tpu_custom_call.1} parent=55 // pred_fallthru
          _
        %v513 = vld [vmem:[%s431] sm:$0x1]
        %v514 = vld [vmem:[%s439] sm:$0x1]
        %v516 = vpack.i.b16 %v513, %v513
        %v518 = vlaneseq
        %v519 = vshrl.u32 %v518, 7
        %v520 = vsub.s32 0, %v519
        %v521 = vrot.slane %v516, %v520
        %523 = vbcast.lane.c.b16.xlu0 %v521, 256
        %v524 = vpop.permute.xlu0 %523
        %v525 = vshrl.u32 %v513, 16
        %v526 = vpack.i.b16 %v525, %v525
        %v528 = vlaneseq
        %v529 = vshrl.u32 %v528, 7
        %v530 = vsub.s32 0, %v529
        %v531 = vrot.slane %v526, %v530
        %533 = vbcast.lane.c.b16.xlu0 %v531, 256
        %v534 = vpop.permute.xlu0 %533
        %v536 = vunpack.i.l.s16 %v514
        %v537 = vunpack.i.h.s16 %v514
        %v538 = vpack.i.b16 %v536, %v536
        %v539 = vpack.i.b16 %v537, %v537
        %v540 = vlaneseq
        %v541 = vshrl.u32 %v540, 7
        %v542 = vsub.s32 0, %v541
        %v543 = vrot.slane %v538, %v542
        %v544 = vlaneseq
        %v545 = vshrl.u32 %v544, 7
        %v546 = vsub.s32 0, %v545
        %v547 = vrot.slane %v539, %v546
        %v549 = vpack.i.b16 %v543, %v543
        %v551 = vlaneseq
        %v552 = vshrl.u32 %v551, 7
        %v553 = vsub.s32 0, %v552
        %v554 = vrot.slane %v549, %v553
        %v556 = vpack.i.b16 %v547, %v547
        %v558 = vlaneseq
        %v559 = vshrl.u32 %v558, 7
        %v560 = vsub.s32 0, %v559
        %v561 = vrot.slane %v556, %v560
        %v562 = vmul.bf16 %v524, %v554
        %v563 = vmul.bf16 %v534, %v561
        %v566 = vpack.i.b16 %v563, %v562
        %v568 = vshrl.u32 %v562, 16
        %v569 = vshrl.u32 %v563, 16
        %v570 = vpack.i.b16 %v569, %v568
        %v573 = vpack.i.b16 0, 0
        %v575 = vshrl.u32 0, 16
        %v576 = vpack.i.b16 %v575, %v575
        %v578 = vcombine.high %v566, %v573
        %v580 = vunpack.c.l.s4 1983009808
        %v581 = vunpack.c.0.s8 %v580
        %v582 = vlaneseq
        %v583 = vshrl.u32 %v582, 7
        %v584 = vsub.s32 %v581, %v583
        %v585 = vrot.slane %v566, %v584
        %v587 = vunpack.c.l.s4 1983009808
        %v588 = vunpack.c.0.s8 %v587
        %v589 = vlaneseq
        %v590 = vshrl.u32 %v589, 7
        %v591 = vsub.s32 %v588, %v590
        %v592 = vrot.slane %v578, %v591
        %v593 = vcombine.high %v585, 0
        %v595 = vunpack.c.l.s4 1934713408
        %v596 = vunpack.c.0.s8 %v595
        %v597 = vlaneseq
        %v598 = vshrl.u32 %v597, 7
        %v599 = vsub.s32 %v596, %v598
        %v600 = vrot.slane %v585, %v599
        %v602 = vunpack.c.l.s4 1934713408
        %v603 = vunpack.c.0.s8 %v602
        %v604 = vlaneseq
        %v605 = vshrl.u32 %v604, 7
        %v606 = vsub.s32 %v603, %v605
        %v607 = vrot.slane %v593, %v606
        %v608 = vcombine.high %v592, 0
        %v610 = vunpack.c.l.s4 1934713408
        %v611 = vunpack.c.0.s8 %v610
        %v612 = vlaneseq
        %v613 = vshrl.u32 %v612, 7
        %v614 = vsub.s32 %v611, %v613
        %v615 = vrot.slane %v592, %v614
        %v617 = vunpack.c.l.s4 1934713408
        %v618 = vunpack.c.0.s8 %v617
        %v619 = vlaneseq
        %v620 = vshrl.u32 %v619, 7
        %v621 = vsub.s32 %v618, %v620
        %v622 = vrot.slane %v608, %v621
        %v623 = vcombine.high %v600, 0
        %v624 = vcombine.high %v607, 0
        %v625 = vcombine.high %v615, 0
        %v626 = vcombine.high %v622, 0
        %v627 = vcombine.high %v570, %v576
        %v629 = vunpack.c.l.s4 1983009808
        %v630 = vunpack.c.0.s8 %v629
        %v631 = vlaneseq
        %v632 = vshrl.u32 %v631, 7
        %v633 = vsub.s32 %v630, %v632
        %v634 = vrot.slane %v570, %v633
        %v636 = vunpack.c.l.s4 1983009808
        %v637 = vunpack.c.0.s8 %v636
        %v638 = vlaneseq
        %v639 = vshrl.u32 %v638, 7
        %v640 = vsub.s32 %v637, %v639
        %v641 = vrot.slane %v627, %v640
        %v642 = vcombine.high %v634, 0
        %v644 = vunpack.c.l.s4 1934713408
        %v645 = vunpack.c.0.s8 %v644
        %v646 = vlaneseq
        %v647 = vshrl.u32 %v646, 7
        %v648 = vsub.s32 %v645, %v647
        %v649 = vrot.slane %v634, %v648
        %v651 = vunpack.c.l.s4 1934713408
        %v652 = vunpack.c.0.s8 %v651
        %v653 = vlaneseq
        %v654 = vshrl.u32 %v653, 7
        %v655 = vsub.s32 %v652, %v654
        %v656 = vrot.slane %v642, %v655
        %v657 = vcombine.high %v641, 0
        %v659 = vunpack.c.l.s4 1934713408
        %v660 = vunpack.c.0.s8 %v659
        %v661 = vlaneseq
        %v662 = vshrl.u32 %v661, 7
        %v663 = vsub.s32 %v660, %v662
        %v664 = vrot.slane %v641, %v663
        %v666 = vunpack.c.l.s4 1934713408
        %v667 = vunpack.c.0.s8 %v666
        %v668 = vlaneseq
        %v669 = vshrl.u32 %v668, 7
        %v670 = vsub.s32 %v667, %v669
        %v671 = vrot.slane %v657, %v670
        %v672 = vcombine.high %v649, 0
        %v673 = vcombine.high %v656, 0
        %v674 = vcombine.high %v664, 0
        %v675 = vcombine.high %v671, 0
        %677 = vrot.lane.b32.xlu0 %v649, 16
        %v678 = vpop.permute.xlu0 %677
        %680 = vrot.lane.b32.xlu0 %v623, 32
        %v681 = vpop.permute.xlu0 %680
        %683 = vrot.lane.b32.xlu0 %v672, 48
        %v684 = vpop.permute.xlu0 %683
        %686 = vrot.lane.b32.xlu0 %v607, 64
        %v687 = vpop.permute.xlu0 %686
        %689 = vrot.lane.b32.xlu0 %v656, 80
        %v690 = vpop.permute.xlu0 %689
        %692 = vrot.lane.b32.xlu0 %v624, 96
        %v693 = vpop.permute.xlu0 %692
        %695 = vrot.lane.b32.xlu0 %v673, 112
        %v696 = vpop.permute.xlu0 %695
        %698 = vrot.lane.b32.xlu0 %v664, 16
        %v699 = vpop.permute.xlu0 %698
        %701 = vrot.lane.b32.xlu0 %v625, 32
        %v702 = vpop.permute.xlu0 %701
        %704 = vrot.lane.b32.xlu0 %v674, 48
        %v705 = vpop.permute.xlu0 %704
        %707 = vrot.lane.b32.xlu0 %v622, 64
        %v708 = vpop.permute.xlu0 %707
        %710 = vrot.lane.b32.xlu0 %v671, 80
        %v711 = vpop.permute.xlu0 %710
        %713 = vrot.lane.b32.xlu0 %v626, 96
        %v714 = vpop.permute.xlu0 %713
        %716 = vrot.lane.b32.xlu0 %v675, 112
        %v717 = vpop.permute.xlu0 %716
        %vm718 = vcmask 130048
        %v721 = vsel %vm718, %v600, %v678
        %vm722 = vcmask 261120
        %v724 = vsel %vm722, %v721, %v681
        %vm725 = vcmask 392192
        %v727 = vsel %vm725, %v724, %v684
        %vm728 = vcmask 523264
        %v730 = vsel %vm728, %v727, %v687
        %vm731 = vcmask 654336
        %v733 = vsel %vm731, %v730, %v690
        %vm734 = vcmask 785408
        %v736 = vsel %vm734, %v733, %v693
        %vm737 = vcmask 916480
        %v739 = vsel %vm737, %v736, %v696
        %v743 = vsel %vm718, %v615, %v699
        %v745 = vsel %vm722, %v743, %v702
        %v747 = vsel %vm725, %v745, %v705
        %v749 = vsel %vm728, %v747, %v708
        %v751 = vsel %vm731, %v749, %v711
        %v753 = vsel %vm734, %v751, %v714
        %v755 = vsel %vm737, %v753, %v717
        %v757 = vld [vmem:[#allocation10] sm:$0xf]
        %v758 = vld [vmem:[#allocation10 + $0x4] sm:$0xf]
        %v759 = vld [vmem:[#allocation10 + $0x8] sm:$0xf]
        %v760 = vld [vmem:[#allocation10 + $0xc] sm:$0xf]
        %v761 = vld [vmem:[#allocation10 + $0x10] sm:$0xf]
        %v762 = vld [vmem:[#allocation10 + $0x14] sm:$0xf]
        %v763 = vld [vmem:[#allocation10 + $0x18] sm:$0xf]
        %v764 = vld [vmem:[#allocation10 + $0x1c] sm:$0xf]
        %v765 = vld [vmem:[#allocation10 + $0x20] sm:$0xf]
        %v766 = vld [vmem:[#allocation10 + $0x24] sm:$0xf]
        %v767 = vld [vmem:[#allocation10 + $0x28] sm:$0xf]
        %v768 = vld [vmem:[#allocation10 + $0x2c] sm:$0xf]
        %v769 = vld [vmem:[#allocation10 + $0x30] sm:$0xf]
        %v770 = vld [vmem:[#allocation10 + $0x34] sm:$0xf]
        %v771 = vld [vmem:[#allocation10 + $0x38] sm:$0xf]
        %v772 = vld [vmem:[#allocation10 + $0x3c] sm:$0xf]
        %v773 = vld [vmem:[#allocation10 + $0x40] sm:$0xf]
        %v774 = vld [vmem:[#allocation10 + $0x44] sm:$0xf]
        %v775 = vld [vmem:[#allocation10 + $0x48] sm:$0xf]
        %v776 = vld [vmem:[#allocation10 + $0x4c] sm:$0xf]
        %v777 = vld [vmem:[#allocation10 + $0x50] sm:$0xf]
        %v778 = vld [vmem:[#allocation10 + $0x54] sm:$0xf]
        %v779 = vld [vmem:[#allocation10 + $0x58] sm:$0xf]
        %v780 = vld [vmem:[#allocation10 + $0x5c] sm:$0xf]
        %v781 = vld [vmem:[#allocation10 + $0x60] sm:$0xf]
        %v782 = vld [vmem:[#allocation10 + $0x64] sm:$0xf]
        %v783 = vld [vmem:[#allocation10 + $0x68] sm:$0xf]
        %v784 = vld [vmem:[#allocation10 + $0x6c] sm:$0xf]
        %v785 = vld [vmem:[#allocation10 + $0x70] sm:$0xf]
        %v786 = vld [vmem:[#allocation10 + $0x74] sm:$0xf]
        %v787 = vld [vmem:[#allocation10 + $0x78] sm:$0xf]
        %v788 = vld [vmem:[#allocation10 + $0x7c] sm:$0xf]
        %v789 = vld [vmem:[%s3] sm:$0x1]
        %v791 = vlaneseq
        %v792 = vshrl.u32 %v791, 7
        %v793 = vsub.s32 0, %v792
        %v794 = vrot.slane %v789, %v793
        %v828 = vunpack.c.l.b16 %v757
        %v829 = vunpack.c.l.b16 %v758
        %v830 = vunpack.c.l.b16 %v759
        %v831 = vunpack.c.l.b16 %v760
        %v832 = vunpack.c.l.b16 %v761
        %v833 = vunpack.c.l.b16 %v762
        %v834 = vunpack.c.l.b16 %v763
        %v835 = vunpack.c.l.b16 %v764
        %v836 = vunpack.c.l.b16 %v765
        %v837 = vunpack.c.l.b16 %v766
        %v838 = vunpack.c.l.b16 %v767
        %v839 = vunpack.c.l.b16 %v768
        %v840 = vunpack.c.l.b16 %v769
        %v841 = vunpack.c.l.b16 %v770
        %v842 = vunpack.c.l.b16 %v771
        %v843 = vunpack.c.l.b16 %v772
        %v844 = vunpack.c.l.b16 %v773
        %v845 = vunpack.c.l.b16 %v774
        %v846 = vunpack.c.l.b16 %v775
        %v847 = vunpack.c.l.b16 %v776
        %v848 = vunpack.c.l.b16 %v777
        %v849 = vunpack.c.l.b16 %v778
        %v850 = vunpack.c.l.b16 %v779
        %v851 = vunpack.c.l.b16 %v780
        %v852 = vunpack.c.l.b16 %v781
        %v853 = vunpack.c.l.b16 %v782
        %v854 = vunpack.c.l.b16 %v783
        %v855 = vunpack.c.l.b16 %v784
        %v856 = vunpack.c.l.b16 %v785
        %v857 = vunpack.c.l.b16 %v786
        %v858 = vunpack.c.l.b16 %v787
        %v859 = vunpack.c.l.b16 %v788
        %v860 = vpack.c.b16 %v829, %v828
        %v861 = vpack.c.b16 %v831, %v830
        %v862 = vpack.c.b16 %v833, %v832
        %v863 = vpack.c.b16 %v835, %v834
        %v864 = vpack.c.b16 %v837, %v836
        %v865 = vpack.c.b16 %v839, %v838
        %v866 = vpack.c.b16 %v841, %v840
        %v867 = vpack.c.b16 %v843, %v842
        %v868 = vpack.c.b16 %v845, %v844
        %v869 = vpack.c.b16 %v847, %v846
        %v870 = vpack.c.b16 %v849, %v848
        %v871 = vpack.c.b16 %v851, %v850
        %v872 = vpack.c.b16 %v853, %v852
        %v873 = vpack.c.b16 %v855, %v854
        %v874 = vpack.c.b16 %v857, %v856
        %v875 = vpack.c.b16 %v859, %v858
        %892 = vmatprep.subr.bf16.mxu0 0
        %893 = vmatpush1.bf16.msra.mxu0 %v860
        %894 = vmatprep.subr.bf16.mxu0 0
        %895 = vmatpush1.bf16.msra.mxu0 %v861
        %896 = vmatprep.subr.bf16.mxu0 0
        %897 = vmatpush1.bf16.msra.mxu0 %v862
        %898 = vmatprep.subr.bf16.mxu0 0
        %899 = vmatpush1.bf16.msra.mxu0 %v863
        %900 = vmatprep.subr.bf16.mxu0 0
        %901 = vmatpush1.bf16.msra.mxu0 %v864
        %902 = vmatprep.subr.bf16.mxu0 0
        %903 = vmatpush1.bf16.msra.mxu0 %v865
        %904 = vmatprep.subr.bf16.mxu0 0
        %905 = vmatpush1.bf16.msra.mxu0 %v866
        %906 = vmatprep.subr.bf16.mxu0 0
        %907 = vmatpush1.bf16.msra.mxu0 %v867
        %908 = vmatprep.subr.bf16.mxu0 0
        %909 = vmatpush1.bf16.msra.mxu0 %v868
        %910 = vmatprep.subr.bf16.mxu0 0
        %911 = vmatpush1.bf16.msra.mxu0 %v869
        %912 = vmatprep.subr.bf16.mxu0 0
        %913 = vmatpush1.bf16.msra.mxu0 %v870
        %914 = vmatprep.subr.bf16.mxu0 0
        %915 = vmatpush1.bf16.msra.mxu0 %v871
        %916 = vmatprep.subr.bf16.mxu0 0
        %917 = vmatpush1.bf16.msra.mxu0 %v872
        %918 = vmatprep.subr.bf16.mxu0 0
        %919 = vmatpush1.bf16.msra.mxu0 %v873
        %920 = vmatprep.subr.bf16.mxu0 0
        %921 = vmatpush1.bf16.msra.mxu0 %v874
        %922 = vmatprep.subr.bf16.mxu0 0
        %923 = vmatpush1.bf16.msra.mxu0 %v875
        %924 = vmatprep.mubr.bf16.mxu0 %v755
        %925 = vmatmul.mubr.bf16.gmra.mrb[0].mxu0 %v739
        %v926 = vpop.f32.mrb[0].mxu0
        %v927 = vadd.f32 %v794, %v926
        %v928 = vpop.f32.mrb[0].mxu0
        %v929 = vpop.f32.mrb[0].mxu0
        %v930 = vpop.f32.mrb[0].mxu0
        %931 = vdwg.mxu0
        %v932 = vld [vmem:[%s4] sm:$0x1]
        %v933 = vld [vmem:[%s5] sm:$0x1]
        %v934 = vld [vmem:[#allocation2] sm:$0x3]
        %v935 = vld [vmem:[#allocation3] sm:$0x3]
        %v936 = vld [vmem:[#allocation4] sm:$0x3]
        %v938 = vlaneseq
        %v939 = vshrl.u32 %v938, 7
        %v940 = vsub.s32 0, %v939
        %v941 = vrot.slane %v933, %v940
        %v943 = vmul.f32 %v941, %v936
        %v944 = vsub.f32 1.0, %v933
        %v946 = vlaneseq
        %v947 = vshrl.u32 %v946, 7
        %v948 = vsub.s32 0, %v947
        %v949 = vrot.slane %v944, %v948
        %v951 = vmul.f32 %v949, %v935
        %v952 = vadd.f32 %v943, %v951
        %v953 = vmul.f32 %v952, 1.8
        %v954 = vadd.f32 %v953, 0.01
        %v956 = vlaneseq
        %v957 = vshrl.u32 %v956, 7
        %v958 = vsub.s32 0, %v957
        %v959 = vrot.slane %v932, %v958
        %v961 = vmul.f32 %v934, %v959
        %v962 = vsub.f32 1.0, %v932
        %v964 = vlaneseq
        %v965 = vshrl.u32 %v964, 7
        %v966 = vsub.s32 0, %v965
        %v967 = vrot.slane %v962, %v966
        %v969 = vmul.f32 %v967, %v927
        %v970 = vadd.f32 %v961, %v969
        %v971 = vmul.f32 %v954, %v935
        %v972 = vsub.f32 %v970, %v971
        %v973 = vsub.f32 %v972, %v954
        %vm974 = vcmp.gt.f32.partialorder %v973, 0.0
        %v975 = vsel %vm974, 1, 0
        %v976 = vcvt.s32.f32 %v975
        %977 = vst [vmem:[#allocation2] sm:$0x3] %v972
        %978 = vst [vmem:[#allocation3] sm:$0x3] %v976
        %979 = vst [vmem:[#allocation4] sm:$0x3] %v952
        %980 = vst [vmem:[%s480] sm:$0x3] %v972
        %981 = vst [vmem:[%s487] sm:$0x3] %v976
        %982 = vst [vmem:[%s494] sm:$0x3] %v954
        %983 = vst [vmem:[%s501] sm:$0x3] %v952
        %s984 = sand.u32 %s246, 1
        %s985 = scalar_lea.sflag [#allocation7], %s984
        %s986 = sand.u32 %s246, 1
        %s987 = smul.addr %s986, 2
        %s988 = scalar_lea.vmem [#allocation11], %s987
        %s989 = sand.u32 %s39, 1
        %s990 = scalar_lea.sflag [#allocation13], %s989
        %s991 = sand.u32 %s272, 1
        %s992 = smul.addr %s991, 2
        %s993 = scalar_lea.vmem [#allocation12], %s992
        %s994 = sand.u32 %s39, 1
        %s995 = scalar_lea.sflag [#allocation13], %s994
        %s996 = sand.u32 %s298, 1
        %s997 = smul.addr %s996, 2
        %s998 = scalar_lea.vmem [#allocation14], %s997
        %s999 = sand.u32 %s324, 1
        %s1000 = scalar_lea.sflag [#allocation16], %s999
        %s1001 = sand.u32 %s324, 1
        %s1002 = smul.addr %s1001, 2
        %s1003 = scalar_lea.vmem [#allocation15], %s1002
        // Predicated region
        $region73: #{tpu_custom_call.1} parent=55 // pred_check
          %p1004 = pneg %p256
        $region74: #{tpu_custom_call.1} parent=55 // pred_check_branch
          %1006 = sbr.rel (%p1004) target = $region76
        $region75: #{tpu_custom_call.1} parent=55 // pred_region
          %s1008 = ssub.s32 32, 32
          %1009 = vsyncadd %s985, %s1008
          %s1010 = smul.addr %s39, 32
          %s1011 = scalar_lea.hbm %s9, %s1010
          %s1013 = sshll.u32 %s988, 4
          %s1014 = int_to_ptr.vmem [resolvable:$true] %s1013
          %1016 = dma.vmem_to_hbm [thread:$0]  %s1014, 32, %s1011, %s985
        $region76: #{tpu_custom_call.1} parent=55 // pred_fallthru
          _
        // Predicated region
        $region77: #{tpu_custom_call.1} parent=55 // pred_check
          %p1017 = pneg %p282
        $region78: #{tpu_custom_call.1} parent=55 // pred_check_branch
          %1019 = sbr.rel (%p1017) target = $region80
        $region79: #{tpu_custom_call.1} parent=55 // pred_region
          %s1021 = ssub.s32 32, 32
          %1022 = vsyncadd %s990, %s1021
          %s1023 = smul.addr %s39, 32
          %s1024 = scalar_lea.hbm %s10, %s1023
          %s1026 = sshll.u32 %s993, 4
          %s1027 = int_to_ptr.vmem [resolvable:$true] %s1026
          %1029 = dma.vmem_to_hbm [thread:$0]  %s1027, 32, %s1024, %s990
        $region80: #{tpu_custom_call.1} parent=55 // pred_fallthru
          _
        // Predicated region
        $region81: #{tpu_custom_call.1} parent=55 // pred_check
          %p1030 = pneg %p308
        $region82: #{tpu_custom_call.1} parent=55 // pred_check_branch
          %1032 = sbr.rel (%p1030) target = $region84
        $region83: #{tpu_custom_call.1} parent=55 // pred_region
          %s1034 = ssub.s32 32, 32
          %1035 = vsyncadd %s995, %s1034
          %s1036 = smul.addr %s39, 32
          %s1037 = scalar_lea.hbm %s11, %s1036
          %s1039 = sshll.u32 %s998, 4
          %s1040 = int_to_ptr.vmem [resolvable:$true] %s1039
          %1042 = dma.vmem_to_hbm [thread:$0]  %s1040, 32, %s1037, %s995
        $region84: #{tpu_custom_call.1} parent=55 // pred_fallthru
          _
        // Predicated region
        $region85: #{tpu_custom_call.1} parent=55 // pred_check
          %p1043 = pneg %p334
        $region86: #{tpu_custom_call.1} parent=55 // pred_check_branch
          %1045 = sbr.rel (%p1043) target = $region88
        $region87: #{tpu_custom_call.1} parent=55 // pred_region
          %s1047 = ssub.s32 32, 32
          %1048 = vsyncadd %s1000, %s1047
          %s1049 = smul.addr %s39, 32
          %s1050 = scalar_lea.hbm %s12, %s1049
          %s1052 = sshll.u32 %s1003, 4
          %s1053 = int_to_ptr.vmem [resolvable:$true] %s1052
          %1055 = dma.vmem_to_hbm [thread:$0]  %s1053, 32, %s1050, %s1000
        $region88: #{tpu_custom_call.1} parent=55 // pred_fallthru
          _
      $region56: #{tpu_custom_call.1} parent=5 // pred_fallthru
        _
      %p1056 = scmp.le.s32.totalorder 2, %s34
      // Predicated region
      $region89: #{tpu_custom_call.1} parent=5 // pred_check
        %p1057 = pneg %p1056
      $region90: #{tpu_custom_call.1} parent=5 // pred_check_branch
        %1059 = sbr.rel (%p1057) target = $region92
      $region91: #{tpu_custom_call.1} parent=5 // pred_region
        %s1060 = ssub.s32 %s34, 2
        // Predicated region
        $region93: #{tpu_custom_call.1} parent=91 // pred_check
          %p1061 = pneg %p262
        $region94: #{tpu_custom_call.1} parent=91 // pred_check_branch
          %1063 = sbr.rel (%p1061) target = $region96
        $region95: #{tpu_custom_call.1} parent=91 // pred_region
          %s1064 = sand.u32 %s247, 1
          %s1065 = scalar_lea.sflag [#allocation7], %s1064
          %s1066 = sand.u32 %s247, 1
          %s1067 = smul.addr %s1066, 2
          %s1068 = scalar_lea.vmem [#allocation11], %s1067
          %1069 = dma.done %s1065, 32
        $region96: #{tpu_custom_call.1} parent=91 // pred_fallthru
          _
        // Predicated region
        $region97: #{tpu_custom_call.1} parent=91 // pred_check
          %p1070 = pneg %p288
        $region98: #{tpu_custom_call.1} parent=91 // pred_check_branch
          %1072 = sbr.rel (%p1070) target = $region100
        $region99: #{tpu_custom_call.1} parent=91 // pred_region
          %s1073 = sand.u32 %s40, 1
          %s1074 = scalar_lea.sflag [#allocation13], %s1073
          %s1075 = sand.u32 %s273, 1
          %s1076 = smul.addr %s1075, 2
          %s1077 = scalar_lea.vmem [#allocation12], %s1076
          %1078 = dma.done %s1074, 32
        $region100: #{tpu_custom_call.1} parent=91 // pred_fallthru
          _
        // Predicated region
        $region101: #{tpu_custom_call.1} parent=91 // pred_check
          %p1079 = pneg %p314
        $region102: #{tpu_custom_call.1} parent=91 // pred_check_branch
          %1081 = sbr.rel (%p1079) target = $region104
        $region103: #{tpu_custom_call.1} parent=91 // pred_region
          %s1082 = sand.u32 %s40, 1
          %s1083 = scalar_lea.sflag [#allocation13], %s1082
          %s1084 = sand.u32 %s299, 1
          %s1085 = smul.addr %s1084, 2
          %s1086 = scalar_lea.vmem [#allocation14], %s1085
          %1087 = dma.done %s1083, 32
        $region104: #{tpu_custom_call.1} parent=91 // pred_fallthru
          _
        // Predicated region
        $region105: #{tpu_custom_call.1} parent=91 // pred_check
          %p1088 = pneg %p340
        $region106: #{tpu_custom_call.1} parent=91 // pred_check_branch
          %1090 = sbr.rel (%p1088) target = $region108
        $region107: #{tpu_custom_call.1} parent=91 // pred_region
          %s1091 = sand.u32 %s325, 1
          %s1092 = scalar_lea.sflag [#allocation16], %s1091
          %s1093 = sand.u32 %s325, 1
          %s1094 = smul.addr %s1093, 2
          %s1095 = scalar_lea.vmem [#allocation15], %s1094
          %1096 = dma.done %s1092, 32
        $region108: #{tpu_custom_call.1} parent=91 // pred_fallthru
          _
      $region92: #{tpu_custom_call.1} parent=5 // pred_fallthru
        _
    $region6: #{tpu_custom_call.1} parent=1 // loop_footer
      %s38 = sadd.s32 1, %s34
    $region7: #{tpu_custom_call.1} parent=1 // loop_footer_branch
      %33 = sbr.rel target = $region3
    $region8: #{tpu_custom_call.1} parent=1 // loop_exit
      _
    %1097 = vsyncpa [#allocation6], 1
    %s1098 = scalar_lea.sflag [#allocation6], 1
    %1099 = vsyncpa %s1098, 1
    %1100 = vsyncpa [#allocation9], 1
    %s1101 = scalar_lea.sflag [#allocation9], 1
    %1102 = vsyncpa %s1101, 1
    %1103 = vsyncpa [#allocation7], 1
    %s1104 = scalar_lea.sflag [#allocation7], 1
    %1105 = vsyncpa %s1104, 1
    %1106 = vsyncpa [#allocation13], 1
    %s1107 = scalar_lea.sflag [#allocation13], 1
    %1108 = vsyncpa %s1107, 1
    %1109 = vsyncpa [#allocation16], 1
    %s1110 = scalar_lea.sflag [#allocation16], 1
    %1111 = vsyncpa %s1110, 1

</llo_original>
